<compile_context>
chip_gen: v5e
topology: v5e:2x2
jax: 0.10.0
libtpu: 0.0.40
codegen_flags: <defaults>
</compile_context>

<pallas_src>
import functools

import jax
import jax.numpy as jnp
from jax.experimental import pallas as pl
from jax.experimental.pallas import tpu as pltpu


LANE = 128      # vreg lane width
SUBLANE = 8     # vreg sublane count (f32)

_SUPPORTED_ACTIVATIONS = ("relu", "tanh")   # must satisfy f(0) == 0


def _get_matching_item_in_list(array, idx):
    try:
        return array[idx]
    except IndexError:
        return None


def _round_up(v, m):
    return (v + m - 1) // m * m


def _cdiv(a, b):
    return (a + b - 1) // b


# ----------------------------- Pallas kernel ------------------------------- #

def _fused_stack_kernel(x_ref, *refs, activations, num_layers, compute_dtype):
    """Runs the whole layer stack for one batch tile:

        h_{l+1} = act_l(h_l @ W_l + b_l)

    x_ref : (TB, P_in0)        bf16 input tile (zero-padded features)
    refs  : w_0, b_0, ..., w_{L-1}, b_{L-1}, o_ref
            w_l : (P_in_l, P_out_l) bf16, zero padded, fully VMEM-resident
            b_l : (1, P_out_l)      f32,  zero padded, fully VMEM-resident
            o_ref : (TB, P_out_last) f32 output tile
    """
    o_ref = refs[-1]
    h = x_ref[...]                       # bf16
    y = h
    for l in range(num_layers):          # static unroll: L is small & fixed
        w_ref = refs[2 * l]
        b_ref = refs[2 * l + 1]
        # bf16 x bf16 -> f32 on the MXU; bias added in f32.
        y = jnp.dot(h, w_ref[...], preferred_element_type=jnp.float32) + b_ref[...]
        act = activations[l] if l < len(activations) else None
        if act == "relu":
            y = jnp.maximum(y, 0.0)      # VPU
        elif act == "tanh":
            y = jnp.tanh(y)              # EUP slot, ~free relative to MXU
        elif act is not None:
            raise ValueError(f"unsupported activation: {act}")
        if l + 1 < num_layers:
            h = y.astype(compute_dtype)  # carry bf16 between layers
    o_ref[...] = y.astype(o_ref.dtype)


def fused_layer_stack(x, weights, biases, *, activations, out_dim,
                      compute_dtype=jnp.bfloat16):
    """Single pallas_call executing the whole padded layer stack.

    x        : (B, D_in) f32 (or bf16)
    weights  : tuple of (P_in_l, P_out_l) bf16 zero-padded weights
    biases   : tuple of (1, P_out_l) f32 zero-padded biases
    returns  : (B, out_dim) f32
    """
    B, D_in = x.shape
    L = len(weights)
    P_in0 = weights[0].shape[0]
    P_out_last = weights[-1].shape[1]
    cd_itemsize = jnp.dtype(compute_dtype).itemsize

    # Batch tiling: <=512 rows (multiple of 8); >=2 tiles when B > 8 so the
    # parallel grid axis can be split across both TensorCores on v7x.
    if B <= SUBLANE:
        TB = _round_up(max(B, 1), SUBLANE)
    else:
        TB = min(512, _round_up(_cdiv(B, 2), SUBLANE))
    Bp = _round_up(B, TB)
    num_tiles = Bp // TB

    # Pad/cast the input only to the first layer's padded K width.
    if Bp == B and P_in0 == D_in:
        xp = x.astype(compute_dtype)
    else:
        xp = jnp.zeros((Bp, P_in0), compute_dtype).at[:B, :D_in].set(
            x.astype(compute_dtype))

    # --- VMEM budget (weights resident once; x/out tiles double-buffered) ---
    w_bytes = sum(int(w.size) * w.dtype.itemsize for w in weights)
    b_bytes = sum(int(b.size) * b.dtype.itemsize for b in biases)
    x_tile_bytes = TB * P_in0 * cd_itemsize
    o_tile_bytes = TB * P_out_last * 4
    max_p = max(max(int(w.shape[0]), int(w.shape[1])) for w in weights)
    inter_bytes = 2 * TB * max_p * 4                    # f32 intermediates
    needed = w_bytes + b_bytes + 2 * (x_tile_bytes + o_tile_bytes) + inter_bytes
    vmem_limit = int(min(max(needed + (4 << 20), 16 << 20), 64 << 20))
    # TODO(synk): if the resident weight stack exceeds ~half of VMEM (v7x has
    # 64 MiB/TC), switch the weight specs to memory_space=pl.ANY and stream
    # per-layer weight tiles with pltpu.emit_pipeline instead.

    # --- advisory cost estimate for the XLA scheduler ---
    flops = 2 * Bp * sum(int(w.shape[0]) * int(w.shape[1]) for w in weights)
    transcendentals = sum(
        Bp * int(weights[l].shape[1])
        for l in range(L)
        if (activations[l] if l < len(activations) else None) == "tanh")
    bytes_accessed = (Bp * P_in0 * cd_itemsize + w_bytes + b_bytes
                      + Bp * P_out_last * 4)

    kernel = functools.partial(
        _fused_stack_kernel,
        activations=tuple(activations),
        num_layers=L,
        compute_dtype=compute_dtype,
    )

    # in_specs: x is batch-tiled (pipelined); weights/biases are grid-invariant
    # and kept fully VMEM-resident with NO pipelining double-buffer.
    resident = pl.BlockSpec(memory_space=pltpu.MemorySpace.VMEM)
    in_specs = [pl.BlockSpec((TB, P_in0), lambda i: (i, 0))]
    for _ in range(L):
        in_specs.append(resident)   # w_l
        in_specs.append(resident)   # b_l

    operands = [xp]
    for w, b in zip(weights, biases):
        operands.append(w)
        operands.append(b)

    out = pl.pallas_call(
        kernel,
        out_shape=jax.ShapeDtypeStruct((Bp, P_out_last), jnp.float32),
        grid=(num_tiles,),
        in_specs=in_specs,
        out_specs=pl.BlockSpec((TB, P_out_last), lambda i: (i, 0)),
        compiler_params=pltpu.CompilerParams(
            dimension_semantics=("parallel",),   # batch tiles -> both TCs on v7x
            vmem_limit_bytes=vmem_limit,
        ),
        cost_estimate=pl.CostEstimate(
            flops=flops,
            transcendentals=transcendentals,
            bytes_accessed=bytes_accessed,
        ),
    )(*operands)

    return out[:B, :out_dim]


# ------------------------------- Builder ----------------------------------- #

class Builder:
    """JAX/Pallas port of the PyTorch Builder module.

    `layers` is a list of ("linear", W, b) tuples (W: (d_in, d_out), b: (d_out,));
    `activations` is a list of activation names ("relu" / "tanh").  As in the
    reference, a missing activation at index i means the layer output passes
    through unmodified.  All layers are fused into one Pallas kernel.
    """

    __slots__ = ("layer_type", "layers", "activations", "output",
                 "_weights", "_biases", "_forward")

    def __init__(self, layers, activations=None, compute_dtype=jnp.bfloat16):
        self.layer_type = self._validate_init(layers)
        self.layers = layers
        self.activations = activations if activations else []
        self.output = None
        self._weights = None
        self._biases = None
        self._forward = None
        if self.layer_type == "list" and len(layers) > 0:
            self._build_packed_params(compute_dtype)

    @staticmethod
    def _validate_init(class_input):
        if not isinstance(class_input, list) and (not isinstance(class_input, dict)):
            raise Exception(
                "You must provide your layers and activations as a list or dict "
                "of modules, you provided: {}".format(type(class_input))
            )
        return type(class_input).__name__

    def _build_packed_params(self, compute_dtype):
        # Zero padding is only exact for activations with f(0) == 0.
        for act in self.activations:
            if act is not None and act not in _SUPPORTED_ACTIVATIONS:
                raise ValueError(
                    f"activation {act!r} is not supported by the fused kernel "
                    f"(requires f(0)==0); supported: {_SUPPORTED_ACTIVATIONS}")

        weights, biases = [], []
        prev_out = None
        for kind, w, b in self.layers:
            assert kind == "linear"
            d_in, d_out = w.shape
            if prev_out is not None:
                assert d_in == prev_out, "layer widths must chain"
            prev_out = d_out
            p_in, p_out = _round_up(d_in, LANE), _round_up(d_out, LANE)
            wp = jnp.zeros((p_in, p_out), compute_dtype)
            wp = wp.at[:d_in, :d_out].set(w.astype(compute_dtype))
            bp = jnp.zeros((1, p_out), jnp.float32)
            bp = bp.at[0, :d_out].set(b.astype(jnp.float32))
            weights.append(wp)
            biases.append(bp)
        self._weights = tuple(weights)
        self._biases = tuple(biases)

        out_dim = self.layers[-1][1].shape[1]
        self._forward = jax.jit(
            functools.partial(
                fused_layer_stack,
                activations=tuple(self.activations),
                out_dim=out_dim,
                compute_dtype=compute_dtype,
            )
        )

    def forward(self, x):
        if self.layer_type == "dict":
            pass  # reference implementation is a no-op for dicts
        if self.layer_type == "list":
            if self._forward is not None:
                x = self._forward(x, self._weights, self._biases)
        self.output = x
        return self.output

    __call__ = forward


# -------------------------------- main -------------------------------------- #

if __name__ == "__main__":
    key = jax.random.PRNGKey(0)
    k_x, k_w1, k_b1, k_w2, k_b2 = jax.random.split(key, 5)

    batch, d_in, d_hidden, d_out = 8, 32, 64, 16

    # Deterministic "synthetic checkpoint": PyTorch-Linear-style uniform init.
    def linear_params(kw, kb, fan_in, fan_out):
        bound = 1.0 / jnp.sqrt(fan_in)
        w = jax.random.uniform(kw, (fan_in, fan_out), jnp.float32, -bound, bound)
        b = jax.random.uniform(kb, (fan_out,), jnp.float32, -bound, bound)
        return ("linear", w, b)

    layers = [
        linear_params(k_w1, k_b1, d_in, d_hidden),
        linear_params(k_w2, k_b2, d_hidden, d_out),
    ]
    # Shorter activation list than layer list -> second layer gets no
    # activation, exercising the IndexError branch of _get_matching_item_in_list.
    activations = ["relu"]

    model = Builder(layers, activations)

    x = jax.random.normal(k_x, (batch, d_in), jnp.float32)
    out = jax.block_until_ready(model(x))

    # Reference 1: same math as the kernel (bf16 MXU inputs & bf16 carry,
    # f32 accumulate + f32 bias).
    ref = x.astype(jnp.bfloat16)
    # Reference 2: pure f32 (semantics sanity check, looser tolerance).
    ref_f32 = x
    for idx, (_, w, b) in enumerate(layers):
        y = jnp.dot(ref, w.astype(jnp.bfloat16),
                    preferred_element_type=jnp.float32) + b
        ref_f32 = ref_f32 @ w + b
        act = _get_matching_item_in_list(activations, idx)
        if act == "relu":
            y = jnp.maximum(y, 0.0)
            ref_f32 = jnp.maximum(ref_f32, 0.0)
        elif act == "tanh":
            y = jnp.tanh(y)
            ref_f32 = jnp.tanh(ref_f32)
        ref = y.astype(jnp.bfloat16) if idx + 1 < len(layers) else y

    assert out.shape == (batch, d_out), out.shape
    assert jnp.allclose(out, ref, atol=3e-3, rtol=3e-3), \
        float(jnp.max(jnp.abs(out - ref)))
    assert jnp.allclose(out, ref_f32, atol=5e-2, rtol=5e-2), \
        float(jnp.max(jnp.abs(out - ref_f32)))

    print("KERNEL_OK")
</pallas_src>

<mosaic_0001>
module attributes {stable_mosaic.version = 11 : i64} {
  func.func @_fused_stack_kernel(%arg0: i32, %arg1: memref<8x128xbf16, #tpu.memory_space<vmem>>, %arg2: memref<128x128xbf16, #tpu.memory_space<vmem>>, %arg3: memref<1x128xf32, #tpu.memory_space<vmem>>, %arg4: memref<128x128xbf16, #tpu.memory_space<vmem>>, %arg5: memref<1x128xf32, #tpu.memory_space<vmem>>, %arg6: memref<8x128xf32, #tpu.memory_space<vmem>>) attributes {dimension_semantics = [#tpu.dimension_semantics<parallel>], iteration_bounds = array<i64: 1>, scalar_prefetch = 0 : i64, scratch_operands = 0 : i64, tpu.core_type = #tpu.core_type<tc>, window_params = [{transform_indices = @transform_0, window_bounds = array<i64: 8, 128>}, {pipeline_mode = #tpu.pipeline_mode<synchronous>, transform_indices = @transform_1, window_bounds = array<i64: 128, 128>}, {pipeline_mode = #tpu.pipeline_mode<synchronous>, transform_indices = @transform_2, window_bounds = array<i64: 1, 128>}, {pipeline_mode = #tpu.pipeline_mode<synchronous>, transform_indices = @transform_3, window_bounds = array<i64: 128, 128>}, {pipeline_mode = #tpu.pipeline_mode<synchronous>, transform_indices = @transform_4, window_bounds = array<i64: 1, 128>}, {transform_indices = @transform_5, window_bounds = array<i64: 8, 128>}]} {
    %c0 = arith.constant 0 : index
    %c0_0 = arith.constant 0 : index
    %0 = vector.load %arg1[%c0, %c0_0] : memref<8x128xbf16, #tpu.memory_space<vmem>>, vector<8x128xbf16>
    %c0_1 = arith.constant 0 : index
    %c0_2 = arith.constant 0 : index
    %1 = vector.load %arg2[%c0_1, %c0_2] : memref<128x128xbf16, #tpu.memory_space<vmem>>, vector<128x128xbf16>
    %cst = arith.constant dense<0.000000e+00> : vector<8x128xf32>
    %2 = tpu.matmul %0, %1, %cst {dimension_numbers = #tpu.dot_dimension_numbers<[1], [0], [0], [1], [0, 0, 1, 1], [], []>} : vector<8x128xbf16>, vector<128x128xbf16>, vector<8x128xf32> -> vector<8x128xf32>
    %c0_3 = arith.constant 0 : index
    %c0_4 = arith.constant 0 : index
    %3 = vector.load %arg3[%c0_3, %c0_4] : memref<1x128xf32, #tpu.memory_space<vmem>>, vector<1x128xf32>
    %4 = vector.broadcast %3 : vector<1x128xf32> to vector<8x128xf32>
    %5 = arith.addf %2, %4 : vector<8x128xf32>
    %cst_5 = arith.constant 0.000000e+00 : f32
    %6 = vector.broadcast %cst_5 : f32 to vector<8x128xf32>
    %7 = arith.maximumf %5, %6 : vector<8x128xf32>
    %8 = arith.truncf %7 : vector<8x128xf32> to vector<8x128xbf16>
    %c0_6 = arith.constant 0 : index
    %c0_7 = arith.constant 0 : index
    %9 = vector.load %arg4[%c0_6, %c0_7] : memref<128x128xbf16, #tpu.memory_space<vmem>>, vector<128x128xbf16>
    %cst_8 = arith.constant dense<0.000000e+00> : vector<8x128xf32>
    %10 = tpu.matmul %8, %9, %cst_8 {dimension_numbers = #tpu.dot_dimension_numbers<[1], [0], [0], [1], [0, 0, 1, 1], [], []>} : vector<8x128xbf16>, vector<128x128xbf16>, vector<8x128xf32> -> vector<8x128xf32>
    %c0_9 = arith.constant 0 : index
    %c0_10 = arith.constant 0 : index
    %11 = vector.load %arg5[%c0_9, %c0_10] : memref<1x128xf32, #tpu.memory_space<vmem>>, vector<1x128xf32>
    %12 = vector.broadcast %11 : vector<1x128xf32> to vector<8x128xf32>
    %13 = arith.addf %10, %12 : vector<8x128xf32>
    %c0_11 = arith.constant 0 : index
    %c0_12 = arith.constant 0 : index
    %14 = vector.load %arg6[%c0_11, %c0_12] : memref<8x128xf32, #tpu.memory_space<vmem>>, vector<8x128xf32>
    tpu.vector_store %arg6[%c0_11, %c0_12], %13 {strides = array<i32>} : memref<8x128xf32, #tpu.memory_space<vmem>>, vector<8x128xf32>,
    return
  }
  func.func @transform_0(%arg0: i32) -> (i32, i32) {
    %c0_i32 = arith.constant 0 : i32
    %c0_i32_0 = arith.constant 0 : i32
    return %arg0, %c0_i32 : i32, i32
  }
  func.func @transform_1(%arg0: i32) -> (i32, i32) {
    %c0_i32 = arith.constant 0 : i32
    %c0_i32_0 = arith.constant 0 : i32
    %c0_i32_1 = arith.constant 0 : i32
    return %c0_i32, %c0_i32_0 : i32, i32
  }
  func.func @transform_2(%arg0: i32) -> (i32, i32) {
    %c0_i32 = arith.constant 0 : i32
    %c0_i32_0 = arith.constant 0 : i32
    %c0_i32_1 = arith.constant 0 : i32
    return %c0_i32, %c0_i32_0 : i32, i32
  }
  func.func @transform_3(%arg0: i32) -> (i32, i32) {
    %c0_i32 = arith.constant 0 : i32
    %c0_i32_0 = arith.constant 0 : i32
    %c0_i32_1 = arith.constant 0 : i32
    return %c0_i32, %c0_i32_0 : i32, i32
  }
  func.func @transform_4(%arg0: i32) -> (i32, i32) {
    %c0_i32 = arith.constant 0 : i32
    %c0_i32_0 = arith.constant 0 : i32
    %c0_i32_1 = arith.constant 0 : i32
    return %c0_i32, %c0_i32_0 : i32, i32
  }
  func.func @transform_5(%arg0: i32) -> (i32, i32) {
    %c0_i32 = arith.constant 0 : i32
    %c0_i32_0 = arith.constant 0 : i32
    return %arg0, %c0_i32 : i32, i32
  }
}

</mosaic_0001>

<llo_original>
// kernel: fused_layer_stack.1
$region0: #{fused_layer_stack.1}
  #allocation0 [shape = 'u32[]', space=smem, size = 0x4, offset = 0x4, fixed_abs, tag = 'smem constant byte address 0x4 - core index']
  #allocation1 [shape = 'u32[72,128]{1,0:T(1,128)}', space=vmem, size = 0x9000, scoped, tag = 'internal scratch']
  %s0 = inlined_call_operand.vmem [shape: bf16[8,128], index: 0, kind: input, shape index: {}]
  %s1 = inlined_call_operand.hbm [shape: bf16[128,128], index: 1, kind: input, shape index: {}]
  %s2 = inlined_call_operand.vmem [shape: f32[1,128], index: 2, kind: input, shape index: {}]
  %s3 = inlined_call_operand.hbm [shape: bf16[128,128], index: 3, kind: input, shape index: {}]
  %s4 = inlined_call_operand.vmem [shape: f32[1,128], index: 4, kind: input, shape index: {}]
  %s5 = inlined_call_operand.hbm [shape: f32[8,128], index: 5, kind: output, shape index: {}]
  %s6 = sld [smem:[#allocation0]]
  $region38: #{fused_layer_stack.1} parent=0
    _
  %s8 = ssub.s32 1, %s6
  %s9 = scalar_select 0, %s8, %s6
  $region1: #{fused_layer_stack.1} parent=0
    #allocation2 [shape = 'u8[32768]{0}', space=vmem, size = 0x8000, scoped, tag = 'input window, operand 1, single buffered']
    #allocation3 [shape = 's32[1]{0}', space=sflag, size = 0x4, scoped, tag = 'scoped memory for fused_layer_stack.1']
    #allocation4 [shape = 's32[1]{0}', space=sflag, size = 0x4, scoped, tag = 'scoped memory for fused_layer_stack.1']
    #allocation5 [shape = 'u8[32768]{0}', space=vmem, size = 0x8000, scoped, tag = 'input window, operand 3, single buffered']
    #allocation6 [shape = 's32[1]{0}', space=sflag, size = 0x4, scoped, tag = 'scoped memory for fused_layer_stack.1']
    #allocation7 [shape = 'u8[4096]{0}', space=vmem, size = 0x1000, scoped, tag = 'output window, operand 0, single buffered']
    %10 = vsyncpa [#allocation3], 0
    %11 = vsyncpa [#allocation6], 0
    %12 = vsyncpa [#allocation4], 0
    // Predicated region
    $region2: #{fused_layer_stack.1} parent=1 // pred_check
      _
    $region3: #{fused_layer_stack.1} parent=1 // pred_check_branch
      %14 = sbr.rel (0) target = $region5
    $region4: #{fused_layer_stack.1} parent=1 // pred_region
      _
    $region5: #{fused_layer_stack.1} parent=1 // pred_fallthru
      _
    // Predicated region
    $region6: #{fused_layer_stack.1} parent=1 // pred_check
      _
    $region7: #{fused_layer_stack.1} parent=1 // pred_check_branch
      %16 = sbr.rel (0) target = $region9
    $region8: #{fused_layer_stack.1} parent=1 // pred_region
      %18 = vsyncadd [#allocation3], 0
      %s19 = sshll.u32 %s1, 4
      %s20 = int_to_ptr.hbm [resolvable:$true] %s19
      %s21 = sshll.u32 [#allocation2], 4
      %s22 = int_to_ptr.vmem [resolvable:$true] %s21
      %27 = dma.hbm_to_vmem [thread:$0]  %s20, 1024, %s22, [#allocation3], 64, 64, 4
    $region9: #{fused_layer_stack.1} parent=1 // pred_fallthru
      _
    // Predicated region
    $region10: #{fused_layer_stack.1} parent=1 // pred_check
      _
    $region11: #{fused_layer_stack.1} parent=1 // pred_check_branch
      %29 = sbr.rel (0) target = $region13
    $region12: #{fused_layer_stack.1} parent=1 // pred_region
      _
    $region13: #{fused_layer_stack.1} parent=1 // pred_fallthru
      _
    // Predicated region
    $region14: #{fused_layer_stack.1} parent=1 // pred_check
      _
    $region15: #{fused_layer_stack.1} parent=1 // pred_check_branch
      %31 = sbr.rel (0) target = $region17
    $region16: #{fused_layer_stack.1} parent=1 // pred_region
      %33 = vsyncadd [#allocation6], 0
      %s34 = sshll.u32 %s3, 4
      %s35 = int_to_ptr.hbm [resolvable:$true] %s34
      %s36 = sshll.u32 [#allocation5], 4
      %s37 = int_to_ptr.vmem [resolvable:$true] %s36
      %42 = dma.hbm_to_vmem [thread:$0]  %s35, 1024, %s37, [#allocation6], 64, 64, 4
    $region17: #{fused_layer_stack.1} parent=1 // pred_fallthru
      _
    // Predicated region
    $region18: #{fused_layer_stack.1} parent=1 // pred_check
      _
    $region19: #{fused_layer_stack.1} parent=1 // pred_check_branch
      %44 = sbr.rel (0) target = $region21
    $region20: #{fused_layer_stack.1} parent=1 // pred_region
      _
    $region21: #{fused_layer_stack.1} parent=1 // pred_fallthru
      _
    // Predicated region
    $region22: #{fused_layer_stack.1} parent=1 // pred_check
      _
    $region23: #{fused_layer_stack.1} parent=1 // pred_check_branch
      %46 = sbr.rel (0) target = $region25
    $region24: #{fused_layer_stack.1} parent=1 // pred_region
      %48 = dma.done [#allocation3], 1024
    $region25: #{fused_layer_stack.1} parent=1 // pred_fallthru
      _
    // Predicated region
    $region26: #{fused_layer_stack.1} parent=1 // pred_check
      _
    $region27: #{fused_layer_stack.1} parent=1 // pred_check_branch
      %50 = sbr.rel (0) target = $region29
    $region28: #{fused_layer_stack.1} parent=1 // pred_region
      %52 = dma.done [#allocation6], 1024
    $region29: #{fused_layer_stack.1} parent=1 // pred_fallthru
      _
    %v53 = vld [vmem:[%s0] sm:$0xf]
    %v54 = vld [vmem:[#allocation2] sm:$0xf]
    %v55 = vld [vmem:[#allocation2 + $0x4] sm:$0xf]
    %v56 = vld [vmem:[#allocation2 + $0x8] sm:$0xf]
    %v57 = vld [vmem:[#allocation2 + $0xc] sm:$0xf]
    %v58 = vld [vmem:[#allocation2 + $0x10] sm:$0xf]
    %v59 = vld [vmem:[#allocation2 + $0x14] sm:$0xf]
    %v60 = vld [vmem:[#allocation2 + $0x18] sm:$0xf]
    %v61 = vld [vmem:[#allocation2 + $0x1c] sm:$0xf]
    %v62 = vld [vmem:[#allocation2 + $0x20] sm:$0xf]
    %v63 = vld [vmem:[#allocation2 + $0x24] sm:$0xf]
    %v64 = vld [vmem:[#allocation2 + $0x28] sm:$0xf]
    %v65 = vld [vmem:[#allocation2 + $0x2c] sm:$0xf]
    %v66 = vld [vmem:[#allocation2 + $0x30] sm:$0xf]
    %v67 = vld [vmem:[#allocation2 + $0x34] sm:$0xf]
    %v68 = vld [vmem:[#allocation2 + $0x38] sm:$0xf]
    %v69 = vld [vmem:[#allocation2 + $0x3c] sm:$0xf]
    %v70 = vld [vmem:[%s2] sm:$0x1]
    %v72 = vperm.slane %v70, 0
    %v90 = vunpack.c.l.b16 %v54
    %v91 = vunpack.c.l.b16 %v55
    %v92 = vunpack.c.l.b16 %v56
    %v93 = vunpack.c.l.b16 %v57
    %v94 = vunpack.c.l.b16 %v58
    %v95 = vunpack.c.l.b16 %v59
    %v96 = vunpack.c.l.b16 %v60
    %v97 = vunpack.c.l.b16 %v61
    %v98 = vunpack.c.l.b16 %v62
    %v99 = vunpack.c.l.b16 %v63
    %v100 = vunpack.c.l.b16 %v64
    %v101 = vunpack.c.l.b16 %v65
    %v102 = vunpack.c.l.b16 %v66
    %v103 = vunpack.c.l.b16 %v67
    %v104 = vunpack.c.l.b16 %v68
    %v105 = vunpack.c.l.b16 %v69
    %v106 = vpack.c.b16 %v91, %v90
    %v107 = vpack.c.b16 %v93, %v92
    %v108 = vpack.c.b16 %v95, %v94
    %v109 = vpack.c.b16 %v97, %v96
    %v110 = vpack.c.b16 %v99, %v98
    %v111 = vpack.c.b16 %v101, %v100
    %v112 = vpack.c.b16 %v103, %v102
    %v113 = vpack.c.b16 %v105, %v104
    %122 = vmatpush.bf16.msra.mxu0 %v113
    %123 = vmatpush.bf16.msra.mxu0 %v112
    %124 = vmatpush.bf16.msra.mxu0 %v111
    %125 = vmatpush.bf16.msra.mxu0 %v110
    %126 = vmatpush.bf16.msra.mxu0 %v109
    %127 = vmatpush.bf16.msra.mxu0 %v108
    %128 = vmatpush.bf16.msra.mxu0 %v107
    %129 = vmatpush.bf16.msra.mxu0 %v106
    %130 = vmatmul.bf16.gmra.mxu0 %v53
    %v131 = vpop.f32.mrf.mxu0
    %v132 = vadd.f32 %v72, %v131
    %v133 = vpop.f32.mrf.mxu0
    %134 = vdwg.mxu0
    %v135 = vmax.f32 %v132, 0.0
    %v136 = vpack.c.bf16 %v135, %v135
    %v137 = vld [vmem:[#allocation5] sm:$0xf]
    %v138 = vld [vmem:[#allocation5 + $0x4] sm:$0xf]
    %v139 = vld [vmem:[#allocation5 + $0x8] sm:$0xf]
    %v140 = vld [vmem:[#allocation5 + $0xc] sm:$0xf]
    %v141 = vld [vmem:[#allocation5 + $0x10] sm:$0xf]
    %v142 = vld [vmem:[#allocation5 + $0x14] sm:$0xf]
    %v143 = vld [vmem:[#allocation5 + $0x18] sm:$0xf]
    %v144 = vld [vmem:[#allocation5 + $0x1c] sm:$0xf]
    %v145 = vld [vmem:[#allocation5 + $0x20] sm:$0xf]
    %v146 = vld [vmem:[#allocation5 + $0x24] sm:$0xf]
    %v147 = vld [vmem:[#allocation5 + $0x28] sm:$0xf]
    %v148 = vld [vmem:[#allocation5 + $0x2c] sm:$0xf]
    %v149 = vld [vmem:[#allocation5 + $0x30] sm:$0xf]
    %v150 = vld [vmem:[#allocation5 + $0x34] sm:$0xf]
    %v151 = vld [vmem:[#allocation5 + $0x38] sm:$0xf]
    %v152 = vld [vmem:[#allocation5 + $0x3c] sm:$0xf]
    %v153 = vld [vmem:[%s4] sm:$0x1]
    %v155 = vperm.slane %v153, 0
    %v173 = vunpack.c.l.b16 %v137
    %v174 = vunpack.c.l.b16 %v138
    %v175 = vunpack.c.l.b16 %v139
    %v176 = vunpack.c.l.b16 %v140
    %v177 = vunpack.c.l.b16 %v141
    %v178 = vunpack.c.l.b16 %v142
    %v179 = vunpack.c.l.b16 %v143
    %v180 = vunpack.c.l.b16 %v144
    %v181 = vunpack.c.l.b16 %v145
    %v182 = vunpack.c.l.b16 %v146
    %v183 = vunpack.c.l.b16 %v147
    %v184 = vunpack.c.l.b16 %v148
    %v185 = vunpack.c.l.b16 %v149
    %v186 = vunpack.c.l.b16 %v150
    %v187 = vunpack.c.l.b16 %v151
    %v188 = vunpack.c.l.b16 %v152
    %v189 = vpack.c.b16 %v174, %v173
    %v190 = vpack.c.b16 %v176, %v175
    %v191 = vpack.c.b16 %v178, %v177
    %v192 = vpack.c.b16 %v180, %v179
    %v193 = vpack.c.b16 %v182, %v181
    %v194 = vpack.c.b16 %v184, %v183
    %v195 = vpack.c.b16 %v186, %v185
    %v196 = vpack.c.b16 %v188, %v187
    %205 = vmatpush.bf16.msra.mxu0 %v196
    %206 = vmatpush.bf16.msra.mxu0 %v195
    %207 = vmatpush.bf16.msra.mxu0 %v194
    %208 = vmatpush.bf16.msra.mxu0 %v193
    %209 = vmatpush.bf16.msra.mxu0 %v192
    %210 = vmatpush.bf16.msra.mxu0 %v191
    %211 = vmatpush.bf16.msra.mxu0 %v190
    %212 = vmatpush.bf16.msra.mxu0 %v189
    %213 = vmatmul.bf16.gmra.mxu0 %v136
    %v214 = vpop.f32.mrf.mxu0
    %v215 = vadd.f32 %v155, %v214
    %v216 = vpop.f32.mrf.mxu0
    %217 = vdwg.mxu0
    %218 = vst [vmem:[#allocation7] sm:$0xff] %v215
    // Predicated region
    $region30: #{fused_layer_stack.1} parent=1 // pred_check
      _
    $region31: #{fused_layer_stack.1} parent=1 // pred_check_branch
      %220 = sbr.rel (0) target = $region33
    $region32: #{fused_layer_stack.1} parent=1 // pred_region
      %222 = vsyncadd [#allocation4], 0
      %s224 = sshll.u32 [#allocation7], 4
      %s225 = int_to_ptr.vmem [resolvable:$true] %s224
      %s226 = sshll.u32 %s5, 4
      %s227 = int_to_ptr.hbm [resolvable:$true] %s226
      %229 = dma.vmem_to_hbm [thread:$0]  %s225, 128, %s227, [#allocation4]
    $region33: #{fused_layer_stack.1} parent=1 // pred_fallthru
      _
    // Predicated region
    $region34: #{fused_layer_stack.1} parent=1 // pred_check
      _
    $region35: #{fused_layer_stack.1} parent=1 // pred_check_branch
      %231 = sbr.rel (0) target = $region37
    $region36: #{fused_layer_stack.1} parent=1 // pred_region
      %233 = dma.done [#allocation4], 128
    $region37: #{fused_layer_stack.1} parent=1 // pred_fallthru
      _
    %234 = vsyncpa [#allocation3], 1
    %235 = vsyncpa [#allocation6], 1
    %236 = vsyncpa [#allocation4], 1

</llo_original>
